<compile_context>
chip_gen: v7x
topology: tpu7x:2x2x1
jax: 0.10.0
libtpu: 0.0.40
codegen_flags: <defaults>
</compile_context>

<pallas_src>
import functools

import jax
import jax.numpy as jnp
from jax import lax
from jax.experimental import pallas as pl
from jax.experimental.pallas import tpu as pltpu


# ----------------------------- Pallas kernel ------------------------------- #
def lstm_fc_kernel(x_ref, wih_ref, whh_ref, b_ref, wfc_ref, bfc_ref, out_ref,
                   xg_ref, *, seq_len, batch, hidden_dim, unroll_threshold=16):
    """Single-invocation kernel: full LSTM recurrence + final FC.

    Refs:
      x_ref   : (T*B, C)     all timesteps, time-major, flattened
      wih_ref : (C, 4H)      input->gates weight   (i|f|g|o; g columns pre-scaled x2)
      whh_ref : (H, 4H)      hidden->gates weight  (g columns pre-scaled x2)
      b_ref   : (1, 4H)      b_ih + b_hh           (g lanes pre-scaled x2)
      wfc_ref : (H, OP)      final linear weight, zero-padded to lane-dense OP
      bfc_ref : (1, OP)      final linear bias,   zero-padded to OP
      out_ref : (B, OP)      lane-dense output slab (wrapper slices to O)
      xg_ref  : (T*B, 4H)    VMEM scratch holding the precomputed input projection
                             (only used on the fori_loop path for large T)
    """
    B = batch
    H = hidden_dim

    # Hoisted loads: each weight is read from VMEM exactly once.
    w_hh = whh_ref[...]
    w_fc = wfc_ref[...]
    b_fc = bfc_ref[...]

    # Input projection for every timestep in one MXU pass: (T*B, 4H).
    xg = (jnp.dot(x_ref[...], wih_ref[...], preferred_element_type=jnp.float32)
          + b_ref[...])

    def combine(xg_t, h, c):
        # gates already carry the x2 on the g-gate lanes (folded into the weights),
        # so a single full-vreg sigmoid covers all four gates:
        #   i, f, o = sigmoid(.)          g = tanh(.) = 2*sigmoid(2*.) - 1
        gates = xg_t + jnp.dot(h, w_hh, preferred_element_type=jnp.float32)
        sig = jax.nn.sigmoid(gates)                       # one EUP pass per step

        i_g = sig[:, 0 * H:1 * H]
        f_g = sig[:, 1 * H:2 * H]
        g_g = 2.0 * sig[:, 2 * H:3 * H] - 1.0
        o_g = sig[:, 3 * H:4 * H]

        c = f_g * c + i_g * g_g
        h = o_g * jnp.tanh(c)
        return h, c

    h = jnp.zeros((B, H), jnp.float32)
    c = jnp.zeros((B, H), jnp.float32)

    if seq_len <= unroll_threshold:
        # Fully static, fully unrolled recurrence; xg stays in vregs.
        for t in range(seq_len):
            h, c = combine(xg[t * B:(t + 1) * B, :], h, c)
    else:
        # Production-length sequences: bounded live ranges via a visible fori_loop;
        # xg is staged through VMEM scratch and sliced dynamically.
        xg_ref[...] = xg

        def body(t, carry):
            h, c = carry
            off = pl.multiple_of(t * B, B)
            return combine(xg_ref[pl.ds(off, B), :], h, c)

        h, c = lax.fori_loop(0, seq_len, body, (h, c))

    out = jnp.dot(h, w_fc, preferred_element_type=jnp.float32) + b_fc
    out_ref[...] = out.astype(out_ref.dtype)


# ------------------------------ JAX wrapper -------------------------------- #
@jax.jit
def lstm4emg_forward(x, params):
    """x: (B, T, C) float32 (batch_first, like PyTorch).  Returns (B, O) f32."""
    B, T, C = x.shape
    w_ih, w_hh, b, w_fc, b_fc = (params["w_ih"], params["w_hh"], params["b"],
                                 params["w_fc"], params["b_fc"])
    H = w_hh.shape[0]
    O = w_fc.shape[1]
    OP = 128 * pl.cdiv(O, 128)            # lane-dense output width

    # Time-major, flattened so the kernel can do one big X @ W_ih matmul.
    x_flat = jnp.transpose(x, (1, 0, 2)).reshape(T * B, C)

    # Fold the x2 of tanh(x) = 2*sigmoid(2x) - 1 into the g-gate columns/lanes.
    lane = jnp.arange(4 * H)
    g_scale = jnp.where((lane >= 2 * H) & (lane < 3 * H), 2.0, 1.0).astype(jnp.float32)
    w_ih_s = w_ih * g_scale[None, :]
    w_hh_s = w_hh * g_scale[None, :]
    b_s = b * g_scale[None, :]

    # Zero-pad the FC weight/bias to a lane-dense output slab.
    w_fc_p = jnp.zeros((H, OP), jnp.float32).at[:, :O].set(w_fc)
    b_fc_p = jnp.zeros((1, OP), jnp.float32).at[:, :O].set(b_fc)

    kernel = functools.partial(lstm_fc_kernel, seq_len=T, batch=B, hidden_dim=H)

    out_padded = pl.pallas_call(
        kernel,
        out_shape=jax.ShapeDtypeStruct((B, OP), jnp.float32),
        in_specs=[pl.BlockSpec(memory_space=pltpu.MemorySpace.VMEM)] * 6,
        out_specs=pl.BlockSpec(memory_space=pltpu.MemorySpace.VMEM),
        scratch_shapes=[pltpu.VMEM((T * B, 4 * H), jnp.float32)],
    )(x_flat, w_ih_s, w_hh_s, b_s, w_fc_p, b_fc_p)

    return out_padded[:, :O]


# --------------------------- pure-JAX reference ----------------------------- #
def lstm4emg_reference(x, params):
    w_ih, w_hh, b, w_fc, b_fc = (params["w_ih"], params["w_hh"], params["b"],
                                 params["w_fc"], params["b_fc"])
    B = x.shape[0]
    H = w_hh.shape[0]

    def step(carry, x_t):
        h, c = carry
        gates = x_t @ w_ih + h @ w_hh + b[0]
        i = jax.nn.sigmoid(gates[:, 0 * H:1 * H])
        f = jax.nn.sigmoid(gates[:, 1 * H:2 * H])
        g = jnp.tanh(gates[:, 2 * H:3 * H])
        o = jax.nn.sigmoid(gates[:, 3 * H:4 * H])
        c = f * c + i * g
        h = o * jnp.tanh(c)
        return (h, c), None

    h0 = jnp.zeros((B, H), jnp.float32)
    c0 = jnp.zeros((B, H), jnp.float32)
    (h_T, _), _ = jax.lax.scan(step, (h0, c0), jnp.transpose(x, (1, 0, 2)))
    return h_T @ w_fc + b_fc[0]


# --------------------------------- main ------------------------------------ #
def init_params(key, input_dim, hidden_dim, output_dim):
    """Deterministic init matching PyTorch LSTM/Linear shapes (stored transposed)."""
    ks = jax.random.split(key, 6)
    k_lstm = 1.0 / jnp.sqrt(hidden_dim)
    k_fc = 1.0 / jnp.sqrt(hidden_dim)
    # PyTorch: weight_ih (4H, C), weight_hh (4H, H), bias_ih/bias_hh (4H,)
    w_ih = jax.random.uniform(ks[0], (input_dim, 4 * hidden_dim), jnp.float32,
                              -k_lstm, k_lstm)
    w_hh = jax.random.uniform(ks[1], (hidden_dim, 4 * hidden_dim), jnp.float32,
                              -k_lstm, k_lstm)
    b_ih = jax.random.uniform(ks[2], (4 * hidden_dim,), jnp.float32, -k_lstm, k_lstm)
    b_hh = jax.random.uniform(ks[3], (4 * hidden_dim,), jnp.float32, -k_lstm, k_lstm)
    # PyTorch: fc.weight (O, H), fc.bias (O,)
    w_fc = jax.random.uniform(ks[4], (hidden_dim, output_dim), jnp.float32,
                              -k_fc, k_fc)
    b_fc = jax.random.uniform(ks[5], (output_dim,), jnp.float32, -k_fc, k_fc)
    return {
        "w_ih": w_ih,
        "w_hh": w_hh,
        "b": (b_ih + b_hh)[None, :],   # (1, 4H)
        "w_fc": w_fc,
        "b_fc": b_fc[None, :],         # (1, O)
    }


if __name__ == "__main__":
    # config: num_channels=4 (input_dim), hidden_dim=32, output_dim=8,
    # num_layers=1, dropout_prob=0, enable_norm=False
    B, T, C, H, O = 8, 8, 4, 32, 8

    key = jax.random.PRNGKey(0)
    k_x, k_p = jax.random.split(key)
    x = jax.random.normal(k_x, (B, T, C), jnp.float32)   # batch_first, like PyTorch
    params = init_params(k_p, C, H, O)

    out = jax.block_until_ready(lstm4emg_forward(x, params))
    ref = lstm4emg_reference(x, params)

    assert out.shape == (B, O)
    assert jnp.allclose(out, ref, atol=5e-5, rtol=5e-5), (
        f"max abs err {jnp.max(jnp.abs(out - ref))}")

    print("KERNEL_OK")
</pallas_src>

<mosaic_0001>
module attributes {stable_mosaic.version = 11 : i64} {
  func.func @lstm_fc_kernel(%arg0: memref<64x4xf32, #tpu.memory_space<vmem>>, %arg1: memref<4x128xf32, #tpu.memory_space<vmem>>, %arg2: memref<32x128xf32, #tpu.memory_space<vmem>>, %arg3: memref<1x128xf32, #tpu.memory_space<vmem>>, %arg4: memref<32x128xf32, #tpu.memory_space<vmem>>, %arg5: memref<1x128xf32, #tpu.memory_space<vmem>>, %arg6: memref<8x128xf32, #tpu.memory_space<vmem>>, %arg7: memref<64x128xf32, #tpu.memory_space<vmem>>) attributes {dimension_semantics = [], scalar_prefetch = 0 : i64, scratch_operands = 1 : i64, tpu.core_type = #tpu.core_type<tc>} {
    %c0 = arith.constant 0 : index
    %c0_0 = arith.constant 0 : index
    %0 = vector.load %arg2[%c0, %c0_0] : memref<32x128xf32, #tpu.memory_space<vmem>>, vector<32x128xf32>
    %c0_1 = arith.constant 0 : index
    %c0_2 = arith.constant 0 : index
    %1 = vector.load %arg4[%c0_1, %c0_2] : memref<32x128xf32, #tpu.memory_space<vmem>>, vector<32x128xf32>
    %c0_3 = arith.constant 0 : index
    %c0_4 = arith.constant 0 : index
    %2 = vector.load %arg5[%c0_3, %c0_4] : memref<1x128xf32, #tpu.memory_space<vmem>>, vector<1x128xf32>
    %c0_5 = arith.constant 0 : index
    %c0_6 = arith.constant 0 : index
    %3 = vector.load %arg0[%c0_5, %c0_6] : memref<64x4xf32, #tpu.memory_space<vmem>>, vector<64x4xf32>
    %c0_7 = arith.constant 0 : index
    %c0_8 = arith.constant 0 : index
    %4 = vector.load %arg1[%c0_7, %c0_8] : memref<4x128xf32, #tpu.memory_space<vmem>>, vector<4x128xf32>
    %cst = arith.constant dense<0.000000e+00> : vector<64x128xf32>
    %5 = tpu.matmul %3, %4, %cst {dimension_numbers = #tpu.dot_dimension_numbers<[1], [0], [0], [1], [0, 0, 1, 1], [], []>} : vector<64x4xf32>, vector<4x128xf32>, vector<64x128xf32> -> vector<64x128xf32>
    %c0_9 = arith.constant 0 : index
    %c0_10 = arith.constant 0 : index
    %6 = vector.load %arg3[%c0_9, %c0_10] : memref<1x128xf32, #tpu.memory_space<vmem>>, vector<1x128xf32>
    %7 = vector.broadcast %6 : vector<1x128xf32> to vector<64x128xf32>
    %8 = arith.addf %5, %7 : vector<64x128xf32>
    %cst_11 = arith.constant 0.000000e+00 : f32
    %9 = vector.broadcast %cst_11 : f32 to vector<8x32xf32>
    %cst_12 = arith.constant 0.000000e+00 : f32
    %10 = vector.broadcast %cst_12 : f32 to vector<8x32xf32>
    %11 = vector.extract_strided_slice %8 {offsets = [0, 0], sizes = [8, 128], strides = [1, 1]} : vector<64x128xf32> to vector<8x128xf32>
    %cst_13 = arith.constant dense<0.000000e+00> : vector<8x128xf32>
    %12 = tpu.matmul %9, %0, %cst_13 {dimension_numbers = #tpu.dot_dimension_numbers<[1], [0], [0], [1], [0, 0, 1, 1], [], []>} : vector<8x32xf32>, vector<32x128xf32>, vector<8x128xf32> -> vector<8x128xf32>
    %13 = arith.addf %11, %12 : vector<8x128xf32>
    %14 = arith.negf %13 : vector<8x128xf32>
    %15 = math.exp %14 : vector<8x128xf32>
    %cst_14 = arith.constant 1.000000e+00 : f32
    %16 = vector.broadcast %cst_14 : f32 to vector<8x128xf32>
    %17 = arith.addf %16, %15 : vector<8x128xf32>
    %18 = arith.divf %16, %17 : vector<8x128xf32>
    %19 = vector.extract_strided_slice %18 {offsets = [0, 0], sizes = [8, 32], strides = [1, 1]} : vector<8x128xf32> to vector<8x32xf32>
    %20 = vector.extract_strided_slice %18 {offsets = [0, 32], sizes = [8, 32], strides = [1, 1]} : vector<8x128xf32> to vector<8x32xf32>
    %21 = vector.extract_strided_slice %18 {offsets = [0, 64], sizes = [8, 32], strides = [1, 1]} : vector<8x128xf32> to vector<8x32xf32>
    %cst_15 = arith.constant 2.000000e+00 : f32
    %22 = vector.broadcast %cst_15 : f32 to vector<8x32xf32>
    %23 = arith.mulf %22, %21 : vector<8x32xf32>
    %cst_16 = arith.constant 1.000000e+00 : f32
    %24 = vector.broadcast %cst_16 : f32 to vector<8x32xf32>
    %25 = arith.subf %23, %24 : vector<8x32xf32>
    %26 = vector.extract_strided_slice %18 {offsets = [0, 96], sizes = [8, 32], strides = [1, 1]} : vector<8x128xf32> to vector<8x32xf32>
    %27 = arith.mulf %20, %10 : vector<8x32xf32>
    %28 = arith.mulf %19, %25 : vector<8x32xf32>
    %29 = arith.addf %27, %28 : vector<8x32xf32>
    %30 = math.tanh %29 : vector<8x32xf32>
    %31 = arith.mulf %26, %30 : vector<8x32xf32>
    %32 = vector.extract_strided_slice %8 {offsets = [8, 0], sizes = [8, 128], strides = [1, 1]} : vector<64x128xf32> to vector<8x128xf32>
    %cst_17 = arith.constant dense<0.000000e+00> : vector<8x128xf32>
    %33 = tpu.matmul %31, %0, %cst_17 {dimension_numbers = #tpu.dot_dimension_numbers<[1], [0], [0], [1], [0, 0, 1, 1], [], []>} : vector<8x32xf32>, vector<32x128xf32>, vector<8x128xf32> -> vector<8x128xf32>
    %34 = arith.addf %32, %33 : vector<8x128xf32>
    %35 = arith.negf %34 : vector<8x128xf32>
    %36 = math.exp %35 : vector<8x128xf32>
    %cst_18 = arith.constant 1.000000e+00 : f32
    %37 = vector.broadcast %cst_18 : f32 to vector<8x128xf32>
    %38 = arith.addf %37, %36 : vector<8x128xf32>
    %39 = arith.divf %37, %38 : vector<8x128xf32>
    %40 = vector.extract_strided_slice %39 {offsets = [0, 0], sizes = [8, 32], strides = [1, 1]} : vector<8x128xf32> to vector<8x32xf32>
    %41 = vector.extract_strided_slice %39 {offsets = [0, 32], sizes = [8, 32], strides = [1, 1]} : vector<8x128xf32> to vector<8x32xf32>
    %42 = vector.extract_strided_slice %39 {offsets = [0, 64], sizes = [8, 32], strides = [1, 1]} : vector<8x128xf32> to vector<8x32xf32>
    %cst_19 = arith.constant 2.000000e+00 : f32
    %43 = vector.broadcast %cst_19 : f32 to vector<8x32xf32>
    %44 = arith.mulf %43, %42 : vector<8x32xf32>
    %cst_20 = arith.constant 1.000000e+00 : f32
    %45 = vector.broadcast %cst_20 : f32 to vector<8x32xf32>
    %46 = arith.subf %44, %45 : vector<8x32xf32>
    %47 = vector.extract_strided_slice %39 {offsets = [0, 96], sizes = [8, 32], strides = [1, 1]} : vector<8x128xf32> to vector<8x32xf32>
    %48 = arith.mulf %41, %29 : vector<8x32xf32>
    %49 = arith.mulf %40, %46 : vector<8x32xf32>
    %50 = arith.addf %48, %49 : vector<8x32xf32>
    %51 = math.tanh %50 : vector<8x32xf32>
    %52 = arith.mulf %47, %51 : vector<8x32xf32>
    %53 = vector.extract_strided_slice %8 {offsets = [16, 0], sizes = [8, 128], strides = [1, 1]} : vector<64x128xf32> to vector<8x128xf32>
    %cst_21 = arith.constant dense<0.000000e+00> : vector<8x128xf32>
    %54 = tpu.matmul %52, %0, %cst_21 {dimension_numbers = #tpu.dot_dimension_numbers<[1], [0], [0], [1], [0, 0, 1, 1], [], []>} : vector<8x32xf32>, vector<32x128xf32>, vector<8x128xf32> -> vector<8x128xf32>
    %55 = arith.addf %53, %54 : vector<8x128xf32>
    %56 = arith.negf %55 : vector<8x128xf32>
    %57 = math.exp %56 : vector<8x128xf32>
    %cst_22 = arith.constant 1.000000e+00 : f32
    %58 = vector.broadcast %cst_22 : f32 to vector<8x128xf32>
    %59 = arith.addf %58, %57 : vector<8x128xf32>
    %60 = arith.divf %58, %59 : vector<8x128xf32>
    %61 = vector.extract_strided_slice %60 {offsets = [0, 0], sizes = [8, 32], strides = [1, 1]} : vector<8x128xf32> to vector<8x32xf32>
    %62 = vector.extract_strided_slice %60 {offsets = [0, 32], sizes = [8, 32], strides = [1, 1]} : vector<8x128xf32> to vector<8x32xf32>
    %63 = vector.extract_strided_slice %60 {offsets = [0, 64], sizes = [8, 32], strides = [1, 1]} : vector<8x128xf32> to vector<8x32xf32>
    %cst_23 = arith.constant 2.000000e+00 : f32
    %64 = vector.broadcast %cst_23 : f32 to vector<8x32xf32>
    %65 = arith.mulf %64, %63 : vector<8x32xf32>
    %cst_24 = arith.constant 1.000000e+00 : f32
    %66 = vector.broadcast %cst_24 : f32 to vector<8x32xf32>
    %67 = arith.subf %65, %66 : vector<8x32xf32>
    %68 = vector.extract_strided_slice %60 {offsets = [0, 96], sizes = [8, 32], strides = [1, 1]} : vector<8x128xf32> to vector<8x32xf32>
    %69 = arith.mulf %62, %50 : vector<8x32xf32>
    %70 = arith.mulf %61, %67 : vector<8x32xf32>
    %71 = arith.addf %69, %70 : vector<8x32xf32>
    %72 = math.tanh %71 : vector<8x32xf32>
    %73 = arith.mulf %68, %72 : vector<8x32xf32>
    %74 = vector.extract_strided_slice %8 {offsets = [24, 0], sizes = [8, 128], strides = [1, 1]} : vector<64x128xf32> to vector<8x128xf32>
    %cst_25 = arith.constant dense<0.000000e+00> : vector<8x128xf32>
    %75 = tpu.matmul %73, %0, %cst_25 {dimension_numbers = #tpu.dot_dimension_numbers<[1], [0], [0], [1], [0, 0, 1, 1], [], []>} : vector<8x32xf32>, vector<32x128xf32>, vector<8x128xf32> -> vector<8x128xf32>
    %76 = arith.addf %74, %75 : vector<8x128xf32>
    %77 = arith.negf %76 : vector<8x128xf32>
    %78 = math.exp %77 : vector<8x128xf32>
    %cst_26 = arith.constant 1.000000e+00 : f32
    %79 = vector.broadcast %cst_26 : f32 to vector<8x128xf32>
    %80 = arith.addf %79, %78 : vector<8x128xf32>
    %81 = arith.divf %79, %80 : vector<8x128xf32>
    %82 = vector.extract_strided_slice %81 {offsets = [0, 0], sizes = [8, 32], strides = [1, 1]} : vector<8x128xf32> to vector<8x32xf32>
    %83 = vector.extract_strided_slice %81 {offsets = [0, 32], sizes = [8, 32], strides = [1, 1]} : vector<8x128xf32> to vector<8x32xf32>
    %84 = vector.extract_strided_slice %81 {offsets = [0, 64], sizes = [8, 32], strides = [1, 1]} : vector<8x128xf32> to vector<8x32xf32>
    %cst_27 = arith.constant 2.000000e+00 : f32
    %85 = vector.broadcast %cst_27 : f32 to vector<8x32xf32>
    %86 = arith.mulf %85, %84 : vector<8x32xf32>
    %cst_28 = arith.constant 1.000000e+00 : f32
    %87 = vector.broadcast %cst_28 : f32 to vector<8x32xf32>
    %88 = arith.subf %86, %87 : vector<8x32xf32>
    %89 = vector.extract_strided_slice %81 {offsets = [0, 96], sizes = [8, 32], strides = [1, 1]} : vector<8x128xf32> to vector<8x32xf32>
    %90 = arith.mulf %83, %71 : vector<8x32xf32>
    %91 = arith.mulf %82, %88 : vector<8x32xf32>
    %92 = arith.addf %90, %91 : vector<8x32xf32>
    %93 = math.tanh %92 : vector<8x32xf32>
    %94 = arith.mulf %89, %93 : vector<8x32xf32>
    %95 = vector.extract_strided_slice %8 {offsets = [32, 0], sizes = [8, 128], strides = [1, 1]} : vector<64x128xf32> to vector<8x128xf32>
    %cst_29 = arith.constant dense<0.000000e+00> : vector<8x128xf32>
    %96 = tpu.matmul %94, %0, %cst_29 {dimension_numbers = #tpu.dot_dimension_numbers<[1], [0], [0], [1], [0, 0, 1, 1], [], []>} : vector<8x32xf32>, vector<32x128xf32>, vector<8x128xf32> -> vector<8x128xf32>
    %97 = arith.addf %95, %96 : vector<8x128xf32>
    %98 = arith.negf %97 : vector<8x128xf32>
    %99 = math.exp %98 : vector<8x128xf32>
    %cst_30 = arith.constant 1.000000e+00 : f32
    %100 = vector.broadcast %cst_30 : f32 to vector<8x128xf32>
    %101 = arith.addf %100, %99 : vector<8x128xf32>
    %102 = arith.divf %100, %101 : vector<8x128xf32>
    %103 = vector.extract_strided_slice %102 {offsets = [0, 0], sizes = [8, 32], strides = [1, 1]} : vector<8x128xf32> to vector<8x32xf32>
    %104 = vector.extract_strided_slice %102 {offsets = [0, 32], sizes = [8, 32], strides = [1, 1]} : vector<8x128xf32> to vector<8x32xf32>
    %105 = vector.extract_strided_slice %102 {offsets = [0, 64], sizes = [8, 32], strides = [1, 1]} : vector<8x128xf32> to vector<8x32xf32>
    %cst_31 = arith.constant 2.000000e+00 : f32
    %106 = vector.broadcast %cst_31 : f32 to vector<8x32xf32>
    %107 = arith.mulf %106, %105 : vector<8x32xf32>
    %cst_32 = arith.constant 1.000000e+00 : f32
    %108 = vector.broadcast %cst_32 : f32 to vector<8x32xf32>
    %109 = arith.subf %107, %108 : vector<8x32xf32>
    %110 = vector.extract_strided_slice %102 {offsets = [0, 96], sizes = [8, 32], strides = [1, 1]} : vector<8x128xf32> to vector<8x32xf32>
    %111 = arith.mulf %104, %92 : vector<8x32xf32>
    %112 = arith.mulf %103, %109 : vector<8x32xf32>
    %113 = arith.addf %111, %112 : vector<8x32xf32>
    %114 = math.tanh %113 : vector<8x32xf32>
    %115 = arith.mulf %110, %114 : vector<8x32xf32>
    %116 = vector.extract_strided_slice %8 {offsets = [40, 0], sizes = [8, 128], strides = [1, 1]} : vector<64x128xf32> to vector<8x128xf32>
    %cst_33 = arith.constant dense<0.000000e+00> : vector<8x128xf32>
    %117 = tpu.matmul %115, %0, %cst_33 {dimension_numbers = #tpu.dot_dimension_numbers<[1], [0], [0], [1], [0, 0, 1, 1], [], []>} : vector<8x32xf32>, vector<32x128xf32>, vector<8x128xf32> -> vector<8x128xf32>
    %118 = arith.addf %116, %117 : vector<8x128xf32>
    %119 = arith.negf %118 : vector<8x128xf32>
    %120 = math.exp %119 : vector<8x128xf32>
    %cst_34 = arith.constant 1.000000e+00 : f32
    %121 = vector.broadcast %cst_34 : f32 to vector<8x128xf32>
    %122 = arith.addf %121, %120 : vector<8x128xf32>
    %123 = arith.divf %121, %122 : vector<8x128xf32>
    %124 = vector.extract_strided_slice %123 {offsets = [0, 0], sizes = [8, 32], strides = [1, 1]} : vector<8x128xf32> to vector<8x32xf32>
    %125 = vector.extract_strided_slice %123 {offsets = [0, 32], sizes = [8, 32], strides = [1, 1]} : vector<8x128xf32> to vector<8x32xf32>
    %126 = vector.extract_strided_slice %123 {offsets = [0, 64], sizes = [8, 32], strides = [1, 1]} : vector<8x128xf32> to vector<8x32xf32>
    %cst_35 = arith.constant 2.000000e+00 : f32
    %127 = vector.broadcast %cst_35 : f32 to vector<8x32xf32>
    %128 = arith.mulf %127, %126 : vector<8x32xf32>
    %cst_36 = arith.constant 1.000000e+00 : f32
    %129 = vector.broadcast %cst_36 : f32 to vector<8x32xf32>
    %130 = arith.subf %128, %129 : vector<8x32xf32>
    %131 = vector.extract_strided_slice %123 {offsets = [0, 96], sizes = [8, 32], strides = [1, 1]} : vector<8x128xf32> to vector<8x32xf32>
    %132 = arith.mulf %125, %113 : vector<8x32xf32>
    %133 = arith.mulf %124, %130 : vector<8x32xf32>
    %134 = arith.addf %132, %133 : vector<8x32xf32>
    %135 = math.tanh %134 : vector<8x32xf32>
    %136 = arith.mulf %131, %135 : vector<8x32xf32>
    %137 = vector.extract_strided_slice %8 {offsets = [48, 0], sizes = [8, 128], strides = [1, 1]} : vector<64x128xf32> to vector<8x128xf32>
    %cst_37 = arith.constant dense<0.000000e+00> : vector<8x128xf32>
    %138 = tpu.matmul %136, %0, %cst_37 {dimension_numbers = #tpu.dot_dimension_numbers<[1], [0], [0], [1], [0, 0, 1, 1], [], []>} : vector<8x32xf32>, vector<32x128xf32>, vector<8x128xf32> -> vector<8x128xf32>
    %139 = arith.addf %137, %138 : vector<8x128xf32>
    %140 = arith.negf %139 : vector<8x128xf32>
    %141 = math.exp %140 : vector<8x128xf32>
    %cst_38 = arith.constant 1.000000e+00 : f32
    %142 = vector.broadcast %cst_38 : f32 to vector<8x128xf32>
    %143 = arith.addf %142, %141 : vector<8x128xf32>
    %144 = arith.divf %142, %143 : vector<8x128xf32>
    %145 = vector.extract_strided_slice %144 {offsets = [0, 0], sizes = [8, 32], strides = [1, 1]} : vector<8x128xf32> to vector<8x32xf32>
    %146 = vector.extract_strided_slice %144 {offsets = [0, 32], sizes = [8, 32], strides = [1, 1]} : vector<8x128xf32> to vector<8x32xf32>
    %147 = vector.extract_strided_slice %144 {offsets = [0, 64], sizes = [8, 32], strides = [1, 1]} : vector<8x128xf32> to vector<8x32xf32>
    %cst_39 = arith.constant 2.000000e+00 : f32
    %148 = vector.broadcast %cst_39 : f32 to vector<8x32xf32>
    %149 = arith.mulf %148, %147 : vector<8x32xf32>
    %cst_40 = arith.constant 1.000000e+00 : f32
    %150 = vector.broadcast %cst_40 : f32 to vector<8x32xf32>
    %151 = arith.subf %149, %150 : vector<8x32xf32>
    %152 = vector.extract_strided_slice %144 {offsets = [0, 96], sizes = [8, 32], strides = [1, 1]} : vector<8x128xf32> to vector<8x32xf32>
    %153 = arith.mulf %146, %134 : vector<8x32xf32>
    %154 = arith.mulf %145, %151 : vector<8x32xf32>
    %155 = arith.addf %153, %154 : vector<8x32xf32>
    %156 = math.tanh %155 : vector<8x32xf32>
    %157 = arith.mulf %152, %156 : vector<8x32xf32>
    %158 = vector.extract_strided_slice %8 {offsets = [56, 0], sizes = [8, 128], strides = [1, 1]} : vector<64x128xf32> to vector<8x128xf32>
    %cst_41 = arith.constant dense<0.000000e+00> : vector<8x128xf32>
    %159 = tpu.matmul %157, %0, %cst_41 {dimension_numbers = #tpu.dot_dimension_numbers<[1], [0], [0], [1], [0, 0, 1, 1], [], []>} : vector<8x32xf32>, vector<32x128xf32>, vector<8x128xf32> -> vector<8x128xf32>
    %160 = arith.addf %158, %159 : vector<8x128xf32>
    %161 = arith.negf %160 : vector<8x128xf32>
    %162 = math.exp %161 : vector<8x128xf32>
    %cst_42 = arith.constant 1.000000e+00 : f32
    %163 = vector.broadcast %cst_42 : f32 to vector<8x128xf32>
    %164 = arith.addf %163, %162 : vector<8x128xf32>
    %165 = arith.divf %163, %164 : vector<8x128xf32>
    %166 = vector.extract_strided_slice %165 {offsets = [0, 0], sizes = [8, 32], strides = [1, 1]} : vector<8x128xf32> to vector<8x32xf32>
    %167 = vector.extract_strided_slice %165 {offsets = [0, 32], sizes = [8, 32], strides = [1, 1]} : vector<8x128xf32> to vector<8x32xf32>
    %168 = vector.extract_strided_slice %165 {offsets = [0, 64], sizes = [8, 32], strides = [1, 1]} : vector<8x128xf32> to vector<8x32xf32>
    %cst_43 = arith.constant 2.000000e+00 : f32
    %169 = vector.broadcast %cst_43 : f32 to vector<8x32xf32>
    %170 = arith.mulf %169, %168 : vector<8x32xf32>
    %cst_44 = arith.constant 1.000000e+00 : f32
    %171 = vector.broadcast %cst_44 : f32 to vector<8x32xf32>
    %172 = arith.subf %170, %171 : vector<8x32xf32>
    %173 = vector.extract_strided_slice %165 {offsets = [0, 96], sizes = [8, 32], strides = [1, 1]} : vector<8x128xf32> to vector<8x32xf32>
    %174 = arith.mulf %167, %155 : vector<8x32xf32>
    %175 = arith.mulf %166, %172 : vector<8x32xf32>
    %176 = arith.addf %174, %175 : vector<8x32xf32>
    %177 = math.tanh %176 : vector<8x32xf32>
    %178 = arith.mulf %173, %177 : vector<8x32xf32>
    %cst_45 = arith.constant dense<0.000000e+00> : vector<8x128xf32>
    %179 = tpu.matmul %178, %1, %cst_45 {dimension_numbers = #tpu.dot_dimension_numbers<[1], [0], [0], [1], [0, 0, 1, 1], [], []>} : vector<8x32xf32>, vector<32x128xf32>, vector<8x128xf32> -> vector<8x128xf32>
    %180 = vector.broadcast %2 : vector<1x128xf32> to vector<8x128xf32>
    %181 = arith.addf %179, %180 : vector<8x128xf32>
    %c0_46 = arith.constant 0 : index
    %c0_47 = arith.constant 0 : index
    %182 = vector.load %arg6[%c0_46, %c0_47] : memref<8x128xf32, #tpu.memory_space<vmem>>, vector<8x128xf32>
    tpu.vector_store %arg6[%c0_46, %c0_47], %181 {strides = array<i32>} : memref<8x128xf32, #tpu.memory_space<vmem>>, vector<8x128xf32>,
    return
  }
}

</mosaic_0001>

<llo_original>
// kernel: lstm4emg_forward.1
$region0: #{lstm4emg_forward.1}
  #allocation0 [shape = 'u32[]', space=smem, size = 0x4, offset = 0x4, fixed_abs, tag = 'smem constant byte address 0x4 - core index']
  #allocation1 [shape = 'u32[144,128]{1,0:T(1,128)}', space=vmem, size = 0x12000, scoped, tag = 'internal scratch']
  #allocation2 [shape = 'f32[64,128]{1,0:T(8,128)}', space=vmem, size = 0x8000, scoped, tag = 'scratch operand']
  %s0 = inlined_call_operand.vmem [shape: f32[64,4], index: 0, kind: input, shape index: {}]
  %s1 = inlined_call_operand.vmem [shape: f32[4,128], index: 1, kind: input, shape index: {}]
  %s2 = inlined_call_operand.vmem [shape: f32[32,128], index: 2, kind: input, shape index: {}]
  %s3 = inlined_call_operand.vmem [shape: f32[1,128], index: 3, kind: input, shape index: {}]
  %s4 = inlined_call_operand.vmem [shape: f32[32,128], index: 4, kind: input, shape index: {}]
  %s5 = inlined_call_operand.vmem [shape: f32[1,128], index: 5, kind: input, shape index: {}]
  %s6 = inlined_call_operand.hbm [shape: f32[8,128], index: 6, kind: output, shape index: {}]
  %s7 = sld [smem:[#allocation0]]
  $region34: #{lstm4emg_forward.1} parent=0
    _
  %s9 = ssub.s32 1, %s7
  %s10 = scalar_select 0, %s9, %s7
  $region1: #{lstm4emg_forward.1} parent=0
    #allocation3 [shape = 'u8[4096]{0}', space=vmem, size = 0x1000, scoped, tag = 'output window, operand 0, single buffered']
    #allocation4 [shape = 's32[1]{0}', space=sflag, size = 0x4, scoped, tag = 'scoped memory for lstm4emg_forward.1']
    %11 = vsyncpa [#allocation4], 0
    // Predicated region
    $region2: #{lstm4emg_forward.1} parent=1 // pred_check
      _
    $region3: #{lstm4emg_forward.1} parent=1 // pred_check_branch
      %13 = sbr.rel (0) target = $region5
    $region4: #{lstm4emg_forward.1} parent=1 // pred_region
      _
    $region5: #{lstm4emg_forward.1} parent=1 // pred_fallthru
      _
    // Predicated region
    $region6: #{lstm4emg_forward.1} parent=1 // pred_check
      _
    $region7: #{lstm4emg_forward.1} parent=1 // pred_check_branch
      %15 = sbr.rel (0) target = $region9
    $region8: #{lstm4emg_forward.1} parent=1 // pred_region
      _
    $region9: #{lstm4emg_forward.1} parent=1 // pred_fallthru
      _
    // Predicated region
    $region10: #{lstm4emg_forward.1} parent=1 // pred_check
      _
    $region11: #{lstm4emg_forward.1} parent=1 // pred_check_branch
      %17 = sbr.rel (0) target = $region13
    $region12: #{lstm4emg_forward.1} parent=1 // pred_region
      _
    $region13: #{lstm4emg_forward.1} parent=1 // pred_fallthru
      _
    // Predicated region
    $region14: #{lstm4emg_forward.1} parent=1 // pred_check
      _
    $region15: #{lstm4emg_forward.1} parent=1 // pred_check_branch
      %19 = sbr.rel (0) target = $region17
    $region16: #{lstm4emg_forward.1} parent=1 // pred_region
      _
    $region17: #{lstm4emg_forward.1} parent=1 // pred_fallthru
      _
    // Predicated region
    $region18: #{lstm4emg_forward.1} parent=1 // pred_check
      _
    $region19: #{lstm4emg_forward.1} parent=1 // pred_check_branch
      %21 = sbr.rel (0) target = $region21
    $region20: #{lstm4emg_forward.1} parent=1 // pred_region
      _
    $region21: #{lstm4emg_forward.1} parent=1 // pred_fallthru
      _
    // Predicated region
    $region22: #{lstm4emg_forward.1} parent=1 // pred_check
      _
    $region23: #{lstm4emg_forward.1} parent=1 // pred_check_branch
      %23 = sbr.rel (0) target = $region25
    $region24: #{lstm4emg_forward.1} parent=1 // pred_region
      _
    $region25: #{lstm4emg_forward.1} parent=1 // pred_fallthru
      _
    %v24 = vld [vmem:[%s2] sm:$0xff]
    %v25 = vld [vmem:[%s2 + $0x8] sm:$0xff]
    %v26 = vld [vmem:[%s2 + $0x10] sm:$0xff]
    %v27 = vld [vmem:[%s2 + $0x18] sm:$0xff]
    %v28 = vld [vmem:[%s4] sm:$0xff]
    %v29 = vld [vmem:[%s4 + $0x8] sm:$0xff]
    %v30 = vld [vmem:[%s4 + $0x10] sm:$0xff]
    %v31 = vld [vmem:[%s4 + $0x18] sm:$0xff]
    %v32 = vld [vmem:[%s5] sm:$0x1]
    %v33 = vld [vmem:[%s0] sm:$0xff]
    %v34 = vld [vmem:[%s0 + $0x8] sm:$0xff]
    %v35 = vld [vmem:[%s0 + $0x10] sm:$0xff]
    %v36 = vld [vmem:[%s0 + $0x18] sm:$0xff]
    %v37 = vld [vmem:[%s0 + $0x20] sm:$0xff]
    %v38 = vld [vmem:[%s0 + $0x28] sm:$0xff]
    %v39 = vld [vmem:[%s0 + $0x30] sm:$0xff]
    %v40 = vld [vmem:[%s0 + $0x38] sm:$0xff]
    %v41 = vld [vmem:[%s1] sm:$0xf]
    %v42 = vld [vmem:[%s3] sm:$0x1]
    %v44 = vlaneseq
    %v45 = vshrl.u32 %v44, 7
    %v46 = vsub.s32 0, %v45
    %v47 = vrot.slane %v42, %v46
    %vm49 = vcmask 31744
    %v51 = vsel %vm49, %v33, 0
    %v54 = vsel %vm49, %v34, 0
    %v57 = vsel %vm49, %v35, 0
    %v60 = vsel %vm49, %v36, 0
    %v63 = vsel %vm49, %v37, 0
    %v66 = vsel %vm49, %v38, 0
    %v69 = vsel %vm49, %v39, 0
    %v72 = vsel %vm49, %v40, 0
    %vm74 = vcmask 1043456
    %v76 = vsel %vm74, %v41, 0
    %78 = vmatprep.subr.mxu0 0.0
    %79 = vmatpush1.msra.mxu0 %v76
    %80 = vmatprep.subr.mxu0 0.0
    %81 = vmatpush1.msra.mxu0 0.0
    %82 = vmatprep.subr.mxu0 0.0
    %83 = vmatpush1.msra.mxu0 0.0
    %84 = vmatprep.subr.mxu0 0.0
    %85 = vmatpush1.msra.mxu0 0.0
    %86 = vmatprep.subr.mxu0 0.0
    %87 = vmatpush1.msra.mxu0 0.0
    %88 = vmatprep.subr.mxu0 0.0
    %89 = vmatpush1.msra.mxu0 0.0
    %90 = vmatprep.subr.mxu0 0.0
    %91 = vmatpush1.msra.mxu0 0.0
    %92 = vmatprep.subr.mxu0 0.0
    %93 = vmatpush1.msra.mxu0 0.0
    %94 = vmatprep.subr.mxu0 0.0
    %95 = vmatpush1.msra.mxu0 0.0
    %96 = vmatprep.subr.mxu0 0.0
    %97 = vmatpush1.msra.mxu0 0.0
    %98 = vmatprep.subr.mxu0 0.0
    %99 = vmatpush1.msra.mxu0 0.0
    %100 = vmatprep.subr.mxu0 0.0
    %101 = vmatpush1.msra.mxu0 0.0
    %102 = vmatprep.subr.mxu0 0.0
    %103 = vmatpush1.msra.mxu0 0.0
    %104 = vmatprep.subr.mxu0 0.0
    %105 = vmatpush1.msra.mxu0 0.0
    %106 = vmatprep.subr.mxu0 0.0
    %107 = vmatpush1.msra.mxu0 0.0
    %108 = vmatprep.subr.mxu0 0.0
    %109 = vmatpush1.msra.mxu0 0.0
    %110 = vmatprep.subr.mxu0 0.0
    %111 = vmatpush1.msra.mxu0 0.0
    %112 = vmatprep.subr.mxu0 0.0
    %113 = vmatpush1.msra.mxu0 0.0
    %114 = vmatprep.subr.mxu0 0.0
    %115 = vmatpush1.msra.mxu0 0.0
    %116 = vmatprep.subr.mxu0 0.0
    %117 = vmatpush1.msra.mxu0 0.0
    %118 = vmatprep.subr.mxu0 0.0
    %119 = vmatpush1.msra.mxu0 0.0
    %120 = vmatprep.subr.mxu0 0.0
    %121 = vmatpush1.msra.mxu0 0.0
    %122 = vmatprep.subr.mxu0 0.0
    %123 = vmatpush1.msra.mxu0 0.0
    %124 = vmatprep.subr.mxu0 0.0
    %125 = vmatpush1.msra.mxu0 0.0
    %126 = vmatprep.subr.mxu0 0.0
    %127 = vmatpush1.msra.mxu0 0.0
    %128 = vmatprep.subr.mxu0 0.0
    %129 = vmatpush1.msra.mxu0 0.0
    %130 = vmatprep.subr.mxu0 0.0
    %131 = vmatpush1.msra.mxu0 0.0
    %132 = vmatprep.subr.mxu0 0.0
    %133 = vmatpush1.msra.mxu0 0.0
    %134 = vmatprep.subr.mxu0 0.0
    %135 = vmatpush1.msra.mxu0 0.0
    %136 = vmatprep.subr.mxu0 0.0
    %137 = vmatpush1.msra.mxu0 0.0
    %138 = vmatprep.subr.mxu0 0.0
    %139 = vmatpush1.msra.mxu0 0.0
    %140 = vmatprep.subr.mxu0 0.0
    %141 = vmatpush1.msra.mxu0 0.0
    %142 = vmatprep.mubr.f32.mxu0 0.0
    %143 = vmatmul.mubr.f32.gmra.mrb[0].mxu0 %v51
    %v144 = vpop.f32.mrb[0].mxu0
    %v145 = vadd.f32 %v47, %v144
    %v146 = vpop.f32.mrb[0].mxu0
    %147 = vmatprep.mubr.f32.mxu0 0.0
    %148 = vmatmul.mubr.f32.gmra.mrb[0].mxu0 %v54
    %v149 = vpop.f32.mrb[0].mxu0
    %v150 = vadd.f32 %v47, %v149
    %v151 = vpop.f32.mrb[0].mxu0
    %152 = vmatprep.mubr.f32.mxu0 0.0
    %153 = vmatmul.mubr.f32.gmra.mrb[0].mxu0 %v57
    %v154 = vpop.f32.mrb[0].mxu0
    %v155 = vadd.f32 %v47, %v154
    %v156 = vpop.f32.mrb[0].mxu0
    %157 = vmatprep.mubr.f32.mxu0 0.0
    %158 = vmatmul.mubr.f32.gmra.mrb[0].mxu0 %v60
    %v159 = vpop.f32.mrb[0].mxu0
    %v160 = vadd.f32 %v47, %v159
    %v161 = vpop.f32.mrb[0].mxu0
    %162 = vmatprep.mubr.f32.mxu0 0.0
    %163 = vmatmul.mubr.f32.gmra.mrb[0].mxu0 %v63
    %v164 = vpop.f32.mrb[0].mxu0
    %v165 = vadd.f32 %v47, %v164
    %v166 = vpop.f32.mrb[0].mxu0
    %167 = vmatprep.mubr.f32.mxu0 0.0
    %168 = vmatmul.mubr.f32.gmra.mrb[0].mxu0 %v66
    %v169 = vpop.f32.mrb[0].mxu0
    %v170 = vadd.f32 %v47, %v169
    %v171 = vpop.f32.mrb[0].mxu0
    %172 = vmatprep.mubr.f32.mxu0 0.0
    %173 = vmatmul.mubr.f32.gmra.mrb[0].mxu0 %v69
    %v174 = vpop.f32.mrb[0].mxu0
    %v175 = vadd.f32 %v47, %v174
    %v176 = vpop.f32.mrb[0].mxu0
    %177 = vmatprep.mubr.f32.mxu0 0.0
    %178 = vmatmul.mubr.f32.gmra.mrb[0].mxu0 %v72
    %v179 = vpop.f32.mrb[0].mxu0
    %v180 = vadd.f32 %v47, %v179
    %v181 = vpop.f32.mrb[0].mxu0
    %182 = vdwg.mxu0
    %vm183 = vcmask 261120
    %v185 = vsel %vm183, 0.0, 0
    %187 = vmatprep.subr.mxu0 0.0
    %188 = vmatpush1.msra.mxu0 %v24
    %189 = vmatprep.subr.mxu0 0.0
    %190 = vmatpush1.msra.mxu0 %v25
    %191 = vmatprep.subr.mxu0 0.0
    %192 = vmatpush1.msra.mxu0 %v26
    %193 = vmatprep.subr.mxu0 0.0
    %194 = vmatpush1.msra.mxu0 %v27
    %195 = vmatprep.subr.mxu0 0.0
    %196 = vmatpush1.msra.mxu0 0.0
    %197 = vmatprep.subr.mxu0 0.0
    %198 = vmatpush1.msra.mxu0 0.0
    %199 = vmatprep.subr.mxu0 0.0
    %200 = vmatpush1.msra.mxu0 0.0
    %201 = vmatprep.subr.mxu0 0.0
    %202 = vmatpush1.msra.mxu0 0.0
    %203 = vmatprep.subr.mxu0 0.0
    %204 = vmatpush1.msra.mxu0 0.0
    %205 = vmatprep.subr.mxu0 0.0
    %206 = vmatpush1.msra.mxu0 0.0
    %207 = vmatprep.subr.mxu0 0.0
    %208 = vmatpush1.msra.mxu0 0.0
    %209 = vmatprep.subr.mxu0 0.0
    %210 = vmatpush1.msra.mxu0 0.0
    %211 = vmatprep.subr.mxu0 0.0
    %212 = vmatpush1.msra.mxu0 0.0
    %213 = vmatprep.subr.mxu0 0.0
    %214 = vmatpush1.msra.mxu0 0.0
    %215 = vmatprep.subr.mxu0 0.0
    %216 = vmatpush1.msra.mxu0 0.0
    %217 = vmatprep.subr.mxu0 0.0
    %218 = vmatpush1.msra.mxu0 0.0
    %219 = vmatprep.subr.mxu0 0.0
    %220 = vmatpush1.msra.mxu0 0.0
    %221 = vmatprep.subr.mxu0 0.0
    %222 = vmatpush1.msra.mxu0 0.0
    %223 = vmatprep.subr.mxu0 0.0
    %224 = vmatpush1.msra.mxu0 0.0
    %225 = vmatprep.subr.mxu0 0.0
    %226 = vmatpush1.msra.mxu0 0.0
    %227 = vmatprep.subr.mxu0 0.0
    %228 = vmatpush1.msra.mxu0 0.0
    %229 = vmatprep.subr.mxu0 0.0
    %230 = vmatpush1.msra.mxu0 0.0
    %231 = vmatprep.subr.mxu0 0.0
    %232 = vmatpush1.msra.mxu0 0.0
    %233 = vmatprep.subr.mxu0 0.0
    %234 = vmatpush1.msra.mxu0 0.0
    %235 = vmatprep.subr.mxu0 0.0
    %236 = vmatpush1.msra.mxu0 0.0
    %237 = vmatprep.subr.mxu0 0.0
    %238 = vmatpush1.msra.mxu0 0.0
    %239 = vmatprep.subr.mxu0 0.0
    %240 = vmatpush1.msra.mxu0 0.0
    %241 = vmatprep.subr.mxu0 0.0
    %242 = vmatpush1.msra.mxu0 0.0
    %243 = vmatprep.subr.mxu0 0.0
    %244 = vmatpush1.msra.mxu0 0.0
    %245 = vmatprep.subr.mxu0 0.0
    %246 = vmatpush1.msra.mxu0 0.0
    %247 = vmatprep.subr.mxu0 0.0
    %248 = vmatpush1.msra.mxu0 0.0
    %249 = vmatprep.subr.mxu0 0.0
    %250 = vmatpush1.msra.mxu0 0.0
    %251 = vmatprep.mubr.f32.mxu0 0.0
    %252 = vmatmul.mubr.f32.gmra.mrb[0].mxu0 %v185
    %v253 = vpop.f32.mrb[0].mxu0
    %v254 = vadd.f32 0.0, %v253
    %v255 = vpop.f32.mrb[0].mxu0
    %256 = vdwg.mxu0
    %v257 = vadd.f32 %v145, %v254
    %v258 = vxor.u32 %v257, 2147483648
    %v259 = vmul.f32 %v258, 1.442695
    %v260 = vpow.pop %v259
    %v261 = vadd.f32 %v260, 1.0
    %v262 = vrcp.pop %v261
    %v263 = vmul.f32 1.0, %v262
    %v264 = vmul.f32 %v263, 2.0
    %v265 = vsub.f32 %v264, 1.0
    %v266 = vmul.f32 %v263, 0.0
    %268 = vrot.lane.b32.xlu0 %v265, 64
    %v269 = vpop.permute.xlu0 %268
    %v271 = vmul.f32 %v263, %v269
    %273 = vrot.lane.b32.xlu0 %v271, 32
    %v274 = vpop.permute.xlu0 %273
    %v276 = vadd.f32 %v266, %v274
    %v277 = vtanh.pop %v276
    %279 = vrot.lane.b32.xlu0 %v277, 64
    %v280 = vpop.permute.xlu0 %279
    %v282 = vmul.f32 %v263, %v280
    %284 = vrot.lane.b32.xlu0 %v282, 32
    %v285 = vpop.permute.xlu0 %284
    %v286 = vsel %vm183, %v285, 0
    %288 = vmatprep.subr.mxu0 0.0
    %289 = vmatpush1.msra.mxu0 %v24
    %290 = vmatprep.subr.mxu0 0.0
    %291 = vmatpush1.msra.mxu0 %v25
    %292 = vmatprep.subr.mxu0 0.0
    %293 = vmatpush1.msra.mxu0 %v26
    %294 = vmatprep.subr.mxu0 0.0
    %295 = vmatpush1.msra.mxu0 %v27
    %296 = vmatprep.subr.mxu0 0.0
    %297 = vmatpush1.msra.mxu0 0.0
    %298 = vmatprep.subr.mxu0 0.0
    %299 = vmatpush1.msra.mxu0 0.0
    %300 = vmatprep.subr.mxu0 0.0
    %301 = vmatpush1.msra.mxu0 0.0
    %302 = vmatprep.subr.mxu0 0.0
    %303 = vmatpush1.msra.mxu0 0.0
    %304 = vmatprep.subr.mxu0 0.0
    %305 = vmatpush1.msra.mxu0 0.0
    %306 = vmatprep.subr.mxu0 0.0
    %307 = vmatpush1.msra.mxu0 0.0
    %308 = vmatprep.subr.mxu0 0.0
    %309 = vmatpush1.msra.mxu0 0.0
    %310 = vmatprep.subr.mxu0 0.0
    %311 = vmatpush1.msra.mxu0 0.0
    %312 = vmatprep.subr.mxu0 0.0
    %313 = vmatpush1.msra.mxu0 0.0
    %314 = vmatprep.subr.mxu0 0.0
    %315 = vmatpush1.msra.mxu0 0.0
    %316 = vmatprep.subr.mxu0 0.0
    %317 = vmatpush1.msra.mxu0 0.0
    %318 = vmatprep.subr.mxu0 0.0
    %319 = vmatpush1.msra.mxu0 0.0
    %320 = vmatprep.subr.mxu0 0.0
    %321 = vmatpush1.msra.mxu0 0.0
    %322 = vmatprep.subr.mxu0 0.0
    %323 = vmatpush1.msra.mxu0 0.0
    %324 = vmatprep.subr.mxu0 0.0
    %325 = vmatpush1.msra.mxu0 0.0
    %326 = vmatprep.subr.mxu0 0.0
    %327 = vmatpush1.msra.mxu0 0.0
    %328 = vmatprep.subr.mxu0 0.0
    %329 = vmatpush1.msra.mxu0 0.0
    %330 = vmatprep.subr.mxu0 0.0
    %331 = vmatpush1.msra.mxu0 0.0
    %332 = vmatprep.subr.mxu0 0.0
    %333 = vmatpush1.msra.mxu0 0.0
    %334 = vmatprep.subr.mxu0 0.0
    %335 = vmatpush1.msra.mxu0 0.0
    %336 = vmatprep.subr.mxu0 0.0
    %337 = vmatpush1.msra.mxu0 0.0
    %338 = vmatprep.subr.mxu0 0.0
    %339 = vmatpush1.msra.mxu0 0.0
    %340 = vmatprep.subr.mxu0 0.0
    %341 = vmatpush1.msra.mxu0 0.0
    %342 = vmatprep.subr.mxu0 0.0
    %343 = vmatpush1.msra.mxu0 0.0
    %344 = vmatprep.subr.mxu0 0.0
    %345 = vmatpush1.msra.mxu0 0.0
    %346 = vmatprep.subr.mxu0 0.0
    %347 = vmatpush1.msra.mxu0 0.0
    %348 = vmatprep.subr.mxu0 0.0
    %349 = vmatpush1.msra.mxu0 0.0
    %350 = vmatprep.subr.mxu0 0.0
    %351 = vmatpush1.msra.mxu0 0.0
    %352 = vmatprep.mubr.f32.mxu0 0.0
    %353 = vmatmul.mubr.f32.gmra.mrb[0].mxu0 %v286
    %v354 = vpop.f32.mrb[0].mxu0
    %v355 = vadd.f32 0.0, %v354
    %v356 = vpop.f32.mrb[0].mxu0
    %357 = vdwg.mxu0
    %v358 = vadd.f32 %v150, %v355
    %v359 = vxor.u32 %v358, 2147483648
    %v360 = vmul.f32 %v359, 1.442695
    %v361 = vpow.pop %v360
    %v362 = vadd.f32 %v361, 1.0
    %v363 = vrcp.pop %v362
    %v364 = vmul.f32 1.0, %v363
    %v365 = vmul.f32 %v364, 2.0
    %v366 = vsub.f32 %v365, 1.0
    %v367 = vmul.f32 %v364, %v276
    %369 = vrot.lane.b32.xlu0 %v366, 64
    %v370 = vpop.permute.xlu0 %369
    %v372 = vmul.f32 %v364, %v370
    %374 = vrot.lane.b32.xlu0 %v372, 32
    %v375 = vpop.permute.xlu0 %374
    %v377 = vadd.f32 %v367, %v375
    %v378 = vtanh.pop %v377
    %380 = vrot.lane.b32.xlu0 %v378, 64
    %v381 = vpop.permute.xlu0 %380
    %v383 = vmul.f32 %v364, %v381
    %385 = vrot.lane.b32.xlu0 %v383, 32
    %v386 = vpop.permute.xlu0 %385
    %v387 = vsel %vm183, %v386, 0
    %389 = vmatprep.subr.mxu0 0.0
    %390 = vmatpush1.msra.mxu0 %v24
    %391 = vmatprep.subr.mxu0 0.0
    %392 = vmatpush1.msra.mxu0 %v25
    %393 = vmatprep.subr.mxu0 0.0
    %394 = vmatpush1.msra.mxu0 %v26
    %395 = vmatprep.subr.mxu0 0.0
    %396 = vmatpush1.msra.mxu0 %v27
    %397 = vmatprep.subr.mxu0 0.0
    %398 = vmatpush1.msra.mxu0 0.0
    %399 = vmatprep.subr.mxu0 0.0
    %400 = vmatpush1.msra.mxu0 0.0
    %401 = vmatprep.subr.mxu0 0.0
    %402 = vmatpush1.msra.mxu0 0.0
    %403 = vmatprep.subr.mxu0 0.0
    %404 = vmatpush1.msra.mxu0 0.0
    %405 = vmatprep.subr.mxu0 0.0
    %406 = vmatpush1.msra.mxu0 0.0
    %407 = vmatprep.subr.mxu0 0.0
    %408 = vmatpush1.msra.mxu0 0.0
    %409 = vmatprep.subr.mxu0 0.0
    %410 = vmatpush1.msra.mxu0 0.0
    %411 = vmatprep.subr.mxu0 0.0
    %412 = vmatpush1.msra.mxu0 0.0
    %413 = vmatprep.subr.mxu0 0.0
    %414 = vmatpush1.msra.mxu0 0.0
    %415 = vmatprep.subr.mxu0 0.0
    %416 = vmatpush1.msra.mxu0 0.0
    %417 = vmatprep.subr.mxu0 0.0
    %418 = vmatpush1.msra.mxu0 0.0
    %419 = vmatprep.subr.mxu0 0.0
    %420 = vmatpush1.msra.mxu0 0.0
    %421 = vmatprep.subr.mxu0 0.0
    %422 = vmatpush1.msra.mxu0 0.0
    %423 = vmatprep.subr.mxu0 0.0
    %424 = vmatpush1.msra.mxu0 0.0
    %425 = vmatprep.subr.mxu0 0.0
    %426 = vmatpush1.msra.mxu0 0.0
    %427 = vmatprep.subr.mxu0 0.0
    %428 = vmatpush1.msra.mxu0 0.0
    %429 = vmatprep.subr.mxu0 0.0
    %430 = vmatpush1.msra.mxu0 0.0
    %431 = vmatprep.subr.mxu0 0.0
    %432 = vmatpush1.msra.mxu0 0.0
    %433 = vmatprep.subr.mxu0 0.0
    %434 = vmatpush1.msra.mxu0 0.0
    %435 = vmatprep.subr.mxu0 0.0
    %436 = vmatpush1.msra.mxu0 0.0
    %437 = vmatprep.subr.mxu0 0.0
    %438 = vmatpush1.msra.mxu0 0.0
    %439 = vmatprep.subr.mxu0 0.0
    %440 = vmatpush1.msra.mxu0 0.0
    %441 = vmatprep.subr.mxu0 0.0
    %442 = vmatpush1.msra.mxu0 0.0
    %443 = vmatprep.subr.mxu0 0.0
    %444 = vmatpush1.msra.mxu0 0.0
    %445 = vmatprep.subr.mxu0 0.0
    %446 = vmatpush1.msra.mxu0 0.0
    %447 = vmatprep.subr.mxu0 0.0
    %448 = vmatpush1.msra.mxu0 0.0
    %449 = vmatprep.subr.mxu0 0.0
    %450 = vmatpush1.msra.mxu0 0.0
    %451 = vmatprep.subr.mxu0 0.0
    %452 = vmatpush1.msra.mxu0 0.0
    %453 = vmatprep.mubr.f32.mxu0 0.0
    %454 = vmatmul.mubr.f32.gmra.mrb[0].mxu0 %v387
    %v455 = vpop.f32.mrb[0].mxu0
    %v456 = vadd.f32 0.0, %v455
    %v457 = vpop.f32.mrb[0].mxu0
    %458 = vdwg.mxu0
    %v459 = vadd.f32 %v155, %v456
    %v460 = vxor.u32 %v459, 2147483648
    %v461 = vmul.f32 %v460, 1.442695
    %v462 = vpow.pop %v461
    %v463 = vadd.f32 %v462, 1.0
    %v464 = vrcp.pop %v463
    %v465 = vmul.f32 1.0, %v464
    %v466 = vmul.f32 %v465, 2.0
    %v467 = vsub.f32 %v466, 1.0
    %v468 = vmul.f32 %v465, %v377
    %470 = vrot.lane.b32.xlu0 %v467, 64
    %v471 = vpop.permute.xlu0 %470
    %v473 = vmul.f32 %v465, %v471
    %475 = vrot.lane.b32.xlu0 %v473, 32
    %v476 = vpop.permute.xlu0 %475
    %v478 = vadd.f32 %v468, %v476
    %v479 = vtanh.pop %v478
    %481 = vrot.lane.b32.xlu0 %v479, 64
    %v482 = vpop.permute.xlu0 %481
    %v484 = vmul.f32 %v465, %v482
    %486 = vrot.lane.b32.xlu0 %v484, 32
    %v487 = vpop.permute.xlu0 %486
    %v488 = vsel %vm183, %v487, 0
    %490 = vmatprep.subr.mxu0 0.0
    %491 = vmatpush1.msra.mxu0 %v24
    %492 = vmatprep.subr.mxu0 0.0
    %493 = vmatpush1.msra.mxu0 %v25
    %494 = vmatprep.subr.mxu0 0.0
    %495 = vmatpush1.msra.mxu0 %v26
    %496 = vmatprep.subr.mxu0 0.0
    %497 = vmatpush1.msra.mxu0 %v27
    %498 = vmatprep.subr.mxu0 0.0
    %499 = vmatpush1.msra.mxu0 0.0
    %500 = vmatprep.subr.mxu0 0.0
    %501 = vmatpush1.msra.mxu0 0.0
    %502 = vmatprep.subr.mxu0 0.0
    %503 = vmatpush1.msra.mxu0 0.0
    %504 = vmatprep.subr.mxu0 0.0
    %505 = vmatpush1.msra.mxu0 0.0
    %506 = vmatprep.subr.mxu0 0.0
    %507 = vmatpush1.msra.mxu0 0.0
    %508 = vmatprep.subr.mxu0 0.0
    %509 = vmatpush1.msra.mxu0 0.0
    %510 = vmatprep.subr.mxu0 0.0
    %511 = vmatpush1.msra.mxu0 0.0
    %512 = vmatprep.subr.mxu0 0.0
    %513 = vmatpush1.msra.mxu0 0.0
    %514 = vmatprep.subr.mxu0 0.0
    %515 = vmatpush1.msra.mxu0 0.0
    %516 = vmatprep.subr.mxu0 0.0
    %517 = vmatpush1.msra.mxu0 0.0
    %518 = vmatprep.subr.mxu0 0.0
    %519 = vmatpush1.msra.mxu0 0.0
    %520 = vmatprep.subr.mxu0 0.0
    %521 = vmatpush1.msra.mxu0 0.0
    %522 = vmatprep.subr.mxu0 0.0
    %523 = vmatpush1.msra.mxu0 0.0
    %524 = vmatprep.subr.mxu0 0.0
    %525 = vmatpush1.msra.mxu0 0.0
    %526 = vmatprep.subr.mxu0 0.0
    %527 = vmatpush1.msra.mxu0 0.0
    %528 = vmatprep.subr.mxu0 0.0
    %529 = vmatpush1.msra.mxu0 0.0
    %530 = vmatprep.subr.mxu0 0.0
    %531 = vmatpush1.msra.mxu0 0.0
    %532 = vmatprep.subr.mxu0 0.0
    %533 = vmatpush1.msra.mxu0 0.0
    %534 = vmatprep.subr.mxu0 0.0
    %535 = vmatpush1.msra.mxu0 0.0
    %536 = vmatprep.subr.mxu0 0.0
    %537 = vmatpush1.msra.mxu0 0.0
    %538 = vmatprep.subr.mxu0 0.0
    %539 = vmatpush1.msra.mxu0 0.0
    %540 = vmatprep.subr.mxu0 0.0
    %541 = vmatpush1.msra.mxu0 0.0
    %542 = vmatprep.subr.mxu0 0.0
    %543 = vmatpush1.msra.mxu0 0.0
    %544 = vmatprep.subr.mxu0 0.0
    %545 = vmatpush1.msra.mxu0 0.0
    %546 = vmatprep.subr.mxu0 0.0
    %547 = vmatpush1.msra.mxu0 0.0
    %548 = vmatprep.subr.mxu0 0.0
    %549 = vmatpush1.msra.mxu0 0.0
    %550 = vmatprep.subr.mxu0 0.0
    %551 = vmatpush1.msra.mxu0 0.0
    %552 = vmatprep.subr.mxu0 0.0
    %553 = vmatpush1.msra.mxu0 0.0
    %554 = vmatprep.mubr.f32.mxu0 0.0
    %555 = vmatmul.mubr.f32.gmra.mrb[0].mxu0 %v488
    %v556 = vpop.f32.mrb[0].mxu0
    %v557 = vadd.f32 0.0, %v556
    %v558 = vpop.f32.mrb[0].mxu0
    %559 = vdwg.mxu0
    %v560 = vadd.f32 %v160, %v557
    %v561 = vxor.u32 %v560, 2147483648
    %v562 = vmul.f32 %v561, 1.442695
    %v563 = vpow.pop %v562
    %v564 = vadd.f32 %v563, 1.0
    %v565 = vrcp.pop %v564
    %v566 = vmul.f32 1.0, %v565
    %v567 = vmul.f32 %v566, 2.0
    %v568 = vsub.f32 %v567, 1.0
    %v569 = vmul.f32 %v566, %v478
    %571 = vrot.lane.b32.xlu0 %v568, 64
    %v572 = vpop.permute.xlu0 %571
    %v574 = vmul.f32 %v566, %v572
    %576 = vrot.lane.b32.xlu0 %v574, 32
    %v577 = vpop.permute.xlu0 %576
    %v579 = vadd.f32 %v569, %v577
    %v580 = vtanh.pop %v579
    %582 = vrot.lane.b32.xlu0 %v580, 64
    %v583 = vpop.permute.xlu0 %582
    %v585 = vmul.f32 %v566, %v583
    %587 = vrot.lane.b32.xlu0 %v585, 32
    %v588 = vpop.permute.xlu0 %587
    %v589 = vsel %vm183, %v588, 0
    %591 = vmatprep.subr.mxu0 0.0
    %592 = vmatpush1.msra.mxu0 %v24
    %593 = vmatprep.subr.mxu0 0.0
    %594 = vmatpush1.msra.mxu0 %v25
    %595 = vmatprep.subr.mxu0 0.0
    %596 = vmatpush1.msra.mxu0 %v26
    %597 = vmatprep.subr.mxu0 0.0
    %598 = vmatpush1.msra.mxu0 %v27
    %599 = vmatprep.subr.mxu0 0.0
    %600 = vmatpush1.msra.mxu0 0.0
    %601 = vmatprep.subr.mxu0 0.0
    %602 = vmatpush1.msra.mxu0 0.0
    %603 = vmatprep.subr.mxu0 0.0
    %604 = vmatpush1.msra.mxu0 0.0
    %605 = vmatprep.subr.mxu0 0.0
    %606 = vmatpush1.msra.mxu0 0.0
    %607 = vmatprep.subr.mxu0 0.0
    %608 = vmatpush1.msra.mxu0 0.0
    %609 = vmatprep.subr.mxu0 0.0
    %610 = vmatpush1.msra.mxu0 0.0
    %611 = vmatprep.subr.mxu0 0.0
    %612 = vmatpush1.msra.mxu0 0.0
    %613 = vmatprep.subr.mxu0 0.0
    %614 = vmatpush1.msra.mxu0 0.0
    %615 = vmatprep.subr.mxu0 0.0
    %616 = vmatpush1.msra.mxu0 0.0
    %617 = vmatprep.subr.mxu0 0.0
    %618 = vmatpush1.msra.mxu0 0.0
    %619 = vmatprep.subr.mxu0 0.0
    %620 = vmatpush1.msra.mxu0 0.0
    %621 = vmatprep.subr.mxu0 0.0
    %622 = vmatpush1.msra.mxu0 0.0
    %623 = vmatprep.subr.mxu0 0.0
    %624 = vmatpush1.msra.mxu0 0.0
    %625 = vmatprep.subr.mxu0 0.0
    %626 = vmatpush1.msra.mxu0 0.0
    %627 = vmatprep.subr.mxu0 0.0
    %628 = vmatpush1.msra.mxu0 0.0
    %629 = vmatprep.subr.mxu0 0.0
    %630 = vmatpush1.msra.mxu0 0.0
    %631 = vmatprep.subr.mxu0 0.0
    %632 = vmatpush1.msra.mxu0 0.0
    %633 = vmatprep.subr.mxu0 0.0
    %634 = vmatpush1.msra.mxu0 0.0
    %635 = vmatprep.subr.mxu0 0.0
    %636 = vmatpush1.msra.mxu0 0.0
    %637 = vmatprep.subr.mxu0 0.0
    %638 = vmatpush1.msra.mxu0 0.0
    %639 = vmatprep.subr.mxu0 0.0
    %640 = vmatpush1.msra.mxu0 0.0
    %641 = vmatprep.subr.mxu0 0.0
    %642 = vmatpush1.msra.mxu0 0.0
    %643 = vmatprep.subr.mxu0 0.0
    %644 = vmatpush1.msra.mxu0 0.0
    %645 = vmatprep.subr.mxu0 0.0
    %646 = vmatpush1.msra.mxu0 0.0
    %647 = vmatprep.subr.mxu0 0.0
    %648 = vmatpush1.msra.mxu0 0.0
    %649 = vmatprep.subr.mxu0 0.0
    %650 = vmatpush1.msra.mxu0 0.0
    %651 = vmatprep.subr.mxu0 0.0
    %652 = vmatpush1.msra.mxu0 0.0
    %653 = vmatprep.subr.mxu0 0.0
    %654 = vmatpush1.msra.mxu0 0.0
    %655 = vmatprep.mubr.f32.mxu0 0.0
    %656 = vmatmul.mubr.f32.gmra.mrb[0].mxu0 %v589
    %v657 = vpop.f32.mrb[0].mxu0
    %v658 = vadd.f32 0.0, %v657
    %v659 = vpop.f32.mrb[0].mxu0
    %660 = vdwg.mxu0
    %v661 = vadd.f32 %v165, %v658
    %v662 = vxor.u32 %v661, 2147483648
    %v663 = vmul.f32 %v662, 1.442695
    %v664 = vpow.pop %v663
    %v665 = vadd.f32 %v664, 1.0
    %v666 = vrcp.pop %v665
    %v667 = vmul.f32 1.0, %v666
    %v668 = vmul.f32 %v667, 2.0
    %v669 = vsub.f32 %v668, 1.0
    %v670 = vmul.f32 %v667, %v579
    %672 = vrot.lane.b32.xlu0 %v669, 64
    %v673 = vpop.permute.xlu0 %672
    %v675 = vmul.f32 %v667, %v673
    %677 = vrot.lane.b32.xlu0 %v675, 32
    %v678 = vpop.permute.xlu0 %677
    %v680 = vadd.f32 %v670, %v678
    %v681 = vtanh.pop %v680
    %683 = vrot.lane.b32.xlu0 %v681, 64
    %v684 = vpop.permute.xlu0 %683
    %v686 = vmul.f32 %v667, %v684
    %688 = vrot.lane.b32.xlu0 %v686, 32
    %v689 = vpop.permute.xlu0 %688
    %v690 = vsel %vm183, %v689, 0
    %692 = vmatprep.subr.mxu0 0.0
    %693 = vmatpush1.msra.mxu0 %v24
    %694 = vmatprep.subr.mxu0 0.0
    %695 = vmatpush1.msra.mxu0 %v25
    %696 = vmatprep.subr.mxu0 0.0
    %697 = vmatpush1.msra.mxu0 %v26
    %698 = vmatprep.subr.mxu0 0.0
    %699 = vmatpush1.msra.mxu0 %v27
    %700 = vmatprep.subr.mxu0 0.0
    %701 = vmatpush1.msra.mxu0 0.0
    %702 = vmatprep.subr.mxu0 0.0
    %703 = vmatpush1.msra.mxu0 0.0
    %704 = vmatprep.subr.mxu0 0.0
    %705 = vmatpush1.msra.mxu0 0.0
    %706 = vmatprep.subr.mxu0 0.0
    %707 = vmatpush1.msra.mxu0 0.0
    %708 = vmatprep.subr.mxu0 0.0
    %709 = vmatpush1.msra.mxu0 0.0
    %710 = vmatprep.subr.mxu0 0.0
    %711 = vmatpush1.msra.mxu0 0.0
    %712 = vmatprep.subr.mxu0 0.0
    %713 = vmatpush1.msra.mxu0 0.0
    %714 = vmatprep.subr.mxu0 0.0
    %715 = vmatpush1.msra.mxu0 0.0
    %716 = vmatprep.subr.mxu0 0.0
    %717 = vmatpush1.msra.mxu0 0.0
    %718 = vmatprep.subr.mxu0 0.0
    %719 = vmatpush1.msra.mxu0 0.0
    %720 = vmatprep.subr.mxu0 0.0
    %721 = vmatpush1.msra.mxu0 0.0
    %722 = vmatprep.subr.mxu0 0.0
    %723 = vmatpush1.msra.mxu0 0.0
    %724 = vmatprep.subr.mxu0 0.0
    %725 = vmatpush1.msra.mxu0 0.0
    %726 = vmatprep.subr.mxu0 0.0
    %727 = vmatpush1.msra.mxu0 0.0
    %728 = vmatprep.subr.mxu0 0.0
    %729 = vmatpush1.msra.mxu0 0.0
    %730 = vmatprep.subr.mxu0 0.0
    %731 = vmatpush1.msra.mxu0 0.0
    %732 = vmatprep.subr.mxu0 0.0
    %733 = vmatpush1.msra.mxu0 0.0
    %734 = vmatprep.subr.mxu0 0.0
    %735 = vmatpush1.msra.mxu0 0.0
    %736 = vmatprep.subr.mxu0 0.0
    %737 = vmatpush1.msra.mxu0 0.0
    %738 = vmatprep.subr.mxu0 0.0
    %739 = vmatpush1.msra.mxu0 0.0
    %740 = vmatprep.subr.mxu0 0.0
    %741 = vmatpush1.msra.mxu0 0.0
    %742 = vmatprep.subr.mxu0 0.0
    %743 = vmatpush1.msra.mxu0 0.0
    %744 = vmatprep.subr.mxu0 0.0
    %745 = vmatpush1.msra.mxu0 0.0
    %746 = vmatprep.subr.mxu0 0.0
    %747 = vmatpush1.msra.mxu0 0.0
    %748 = vmatprep.subr.mxu0 0.0
    %749 = vmatpush1.msra.mxu0 0.0
    %750 = vmatprep.subr.mxu0 0.0
    %751 = vmatpush1.msra.mxu0 0.0
    %752 = vmatprep.subr.mxu0 0.0
    %753 = vmatpush1.msra.mxu0 0.0
    %754 = vmatprep.subr.mxu0 0.0
    %755 = vmatpush1.msra.mxu0 0.0
    %756 = vmatprep.mubr.f32.mxu0 0.0
    %757 = vmatmul.mubr.f32.gmra.mrb[0].mxu0 %v690
    %v758 = vpop.f32.mrb[0].mxu0
    %v759 = vadd.f32 0.0, %v758
    %v760 = vpop.f32.mrb[0].mxu0
    %761 = vdwg.mxu0
    %v762 = vadd.f32 %v170, %v759
    %v763 = vxor.u32 %v762, 2147483648
    %v764 = vmul.f32 %v763, 1.442695
    %v765 = vpow.pop %v764
    %v766 = vadd.f32 %v765, 1.0
    %v767 = vrcp.pop %v766
    %v768 = vmul.f32 1.0, %v767
    %v769 = vmul.f32 %v768, 2.0
    %v770 = vsub.f32 %v769, 1.0
    %v771 = vmul.f32 %v768, %v680
    %773 = vrot.lane.b32.xlu0 %v770, 64
    %v774 = vpop.permute.xlu0 %773
    %v776 = vmul.f32 %v768, %v774
    %778 = vrot.lane.b32.xlu0 %v776, 32
    %v779 = vpop.permute.xlu0 %778
    %v781 = vadd.f32 %v771, %v779
    %v782 = vtanh.pop %v781
    %784 = vrot.lane.b32.xlu0 %v782, 64
    %v785 = vpop.permute.xlu0 %784
    %v787 = vmul.f32 %v768, %v785
    %789 = vrot.lane.b32.xlu0 %v787, 32
    %v790 = vpop.permute.xlu0 %789
    %v791 = vsel %vm183, %v790, 0
    %793 = vmatprep.subr.mxu0 0.0
    %794 = vmatpush1.msra.mxu0 %v24
    %795 = vmatprep.subr.mxu0 0.0
    %796 = vmatpush1.msra.mxu0 %v25
    %797 = vmatprep.subr.mxu0 0.0
    %798 = vmatpush1.msra.mxu0 %v26
    %799 = vmatprep.subr.mxu0 0.0
    %800 = vmatpush1.msra.mxu0 %v27
    %801 = vmatprep.subr.mxu0 0.0
    %802 = vmatpush1.msra.mxu0 0.0
    %803 = vmatprep.subr.mxu0 0.0
    %804 = vmatpush1.msra.mxu0 0.0
    %805 = vmatprep.subr.mxu0 0.0
    %806 = vmatpush1.msra.mxu0 0.0
    %807 = vmatprep.subr.mxu0 0.0
    %808 = vmatpush1.msra.mxu0 0.0
    %809 = vmatprep.subr.mxu0 0.0
    %810 = vmatpush1.msra.mxu0 0.0
    %811 = vmatprep.subr.mxu0 0.0
    %812 = vmatpush1.msra.mxu0 0.0
    %813 = vmatprep.subr.mxu0 0.0
    %814 = vmatpush1.msra.mxu0 0.0
    %815 = vmatprep.subr.mxu0 0.0
    %816 = vmatpush1.msra.mxu0 0.0
    %817 = vmatprep.subr.mxu0 0.0
    %818 = vmatpush1.msra.mxu0 0.0
    %819 = vmatprep.subr.mxu0 0.0
    %820 = vmatpush1.msra.mxu0 0.0
    %821 = vmatprep.subr.mxu0 0.0
    %822 = vmatpush1.msra.mxu0 0.0
    %823 = vmatprep.subr.mxu0 0.0
    %824 = vmatpush1.msra.mxu0 0.0
    %825 = vmatprep.subr.mxu0 0.0
    %826 = vmatpush1.msra.mxu0 0.0
    %827 = vmatprep.subr.mxu0 0.0
    %828 = vmatpush1.msra.mxu0 0.0
    %829 = vmatprep.subr.mxu0 0.0
    %830 = vmatpush1.msra.mxu0 0.0
    %831 = vmatprep.subr.mxu0 0.0
    %832 = vmatpush1.msra.mxu0 0.0
    %833 = vmatprep.subr.mxu0 0.0
    %834 = vmatpush1.msra.mxu0 0.0
    %835 = vmatprep.subr.mxu0 0.0
    %836 = vmatpush1.msra.mxu0 0.0
    %837 = vmatprep.subr.mxu0 0.0
    %838 = vmatpush1.msra.mxu0 0.0
    %839 = vmatprep.subr.mxu0 0.0
    %840 = vmatpush1.msra.mxu0 0.0
    %841 = vmatprep.subr.mxu0 0.0
    %842 = vmatpush1.msra.mxu0 0.0
    %843 = vmatprep.subr.mxu0 0.0
    %844 = vmatpush1.msra.mxu0 0.0
    %845 = vmatprep.subr.mxu0 0.0
    %846 = vmatpush1.msra.mxu0 0.0
    %847 = vmatprep.subr.mxu0 0.0
    %848 = vmatpush1.msra.mxu0 0.0
    %849 = vmatprep.subr.mxu0 0.0
    %850 = vmatpush1.msra.mxu0 0.0
    %851 = vmatprep.subr.mxu0 0.0
    %852 = vmatpush1.msra.mxu0 0.0
    %853 = vmatprep.subr.mxu0 0.0
    %854 = vmatpush1.msra.mxu0 0.0
    %855 = vmatprep.subr.mxu0 0.0
    %856 = vmatpush1.msra.mxu0 0.0
    %857 = vmatprep.mubr.f32.mxu0 0.0
    %858 = vmatmul.mubr.f32.gmra.mrb[0].mxu0 %v791
    %v859 = vpop.f32.mrb[0].mxu0
    %v860 = vadd.f32 0.0, %v859
    %v861 = vpop.f32.mrb[0].mxu0
    %862 = vdwg.mxu0
    %v863 = vadd.f32 %v175, %v860
    %v864 = vxor.u32 %v863, 2147483648
    %v865 = vmul.f32 %v864, 1.442695
    %v866 = vpow.pop %v865
    %v867 = vadd.f32 %v866, 1.0
    %v868 = vrcp.pop %v867
    %v869 = vmul.f32 1.0, %v868
    %v870 = vmul.f32 %v869, 2.0
    %v871 = vsub.f32 %v870, 1.0
    %v872 = vmul.f32 %v869, %v781
    %874 = vrot.lane.b32.xlu0 %v871, 64
    %v875 = vpop.permute.xlu0 %874
    %v877 = vmul.f32 %v869, %v875
    %879 = vrot.lane.b32.xlu0 %v877, 32
    %v880 = vpop.permute.xlu0 %879
    %v882 = vadd.f32 %v872, %v880
    %v883 = vtanh.pop %v882
    %885 = vrot.lane.b32.xlu0 %v883, 64
    %v886 = vpop.permute.xlu0 %885
    %v888 = vmul.f32 %v869, %v886
    %890 = vrot.lane.b32.xlu0 %v888, 32
    %v891 = vpop.permute.xlu0 %890
    %v892 = vsel %vm183, %v891, 0
    %894 = vmatprep.subr.mxu0 0.0
    %895 = vmatpush1.msra.mxu0 %v24
    %896 = vmatprep.subr.mxu0 0.0
    %897 = vmatpush1.msra.mxu0 %v25
    %898 = vmatprep.subr.mxu0 0.0
    %899 = vmatpush1.msra.mxu0 %v26
    %900 = vmatprep.subr.mxu0 0.0
    %901 = vmatpush1.msra.mxu0 %v27
    %902 = vmatprep.subr.mxu0 0.0
    %903 = vmatpush1.msra.mxu0 0.0
    %904 = vmatprep.subr.mxu0 0.0
    %905 = vmatpush1.msra.mxu0 0.0
    %906 = vmatprep.subr.mxu0 0.0
    %907 = vmatpush1.msra.mxu0 0.0
    %908 = vmatprep.subr.mxu0 0.0
    %909 = vmatpush1.msra.mxu0 0.0
    %910 = vmatprep.subr.mxu0 0.0
    %911 = vmatpush1.msra.mxu0 0.0
    %912 = vmatprep.subr.mxu0 0.0
    %913 = vmatpush1.msra.mxu0 0.0
    %914 = vmatprep.subr.mxu0 0.0
    %915 = vmatpush1.msra.mxu0 0.0
    %916 = vmatprep.subr.mxu0 0.0
    %917 = vmatpush1.msra.mxu0 0.0
    %918 = vmatprep.subr.mxu0 0.0
    %919 = vmatpush1.msra.mxu0 0.0
    %920 = vmatprep.subr.mxu0 0.0
    %921 = vmatpush1.msra.mxu0 0.0
    %922 = vmatprep.subr.mxu0 0.0
    %923 = vmatpush1.msra.mxu0 0.0
    %924 = vmatprep.subr.mxu0 0.0
    %925 = vmatpush1.msra.mxu0 0.0
    %926 = vmatprep.subr.mxu0 0.0
    %927 = vmatpush1.msra.mxu0 0.0
    %928 = vmatprep.subr.mxu0 0.0
    %929 = vmatpush1.msra.mxu0 0.0
    %930 = vmatprep.subr.mxu0 0.0
    %931 = vmatpush1.msra.mxu0 0.0
    %932 = vmatprep.subr.mxu0 0.0
    %933 = vmatpush1.msra.mxu0 0.0
    %934 = vmatprep.subr.mxu0 0.0
    %935 = vmatpush1.msra.mxu0 0.0
    %936 = vmatprep.subr.mxu0 0.0
    %937 = vmatpush1.msra.mxu0 0.0
    %938 = vmatprep.subr.mxu0 0.0
    %939 = vmatpush1.msra.mxu0 0.0
    %940 = vmatprep.subr.mxu0 0.0
    %941 = vmatpush1.msra.mxu0 0.0
    %942 = vmatprep.subr.mxu0 0.0
    %943 = vmatpush1.msra.mxu0 0.0
    %944 = vmatprep.subr.mxu0 0.0
    %945 = vmatpush1.msra.mxu0 0.0
    %946 = vmatprep.subr.mxu0 0.0
    %947 = vmatpush1.msra.mxu0 0.0
    %948 = vmatprep.subr.mxu0 0.0
    %949 = vmatpush1.msra.mxu0 0.0
    %950 = vmatprep.subr.mxu0 0.0
    %951 = vmatpush1.msra.mxu0 0.0
    %952 = vmatprep.subr.mxu0 0.0
    %953 = vmatpush1.msra.mxu0 0.0
    %954 = vmatprep.subr.mxu0 0.0
    %955 = vmatpush1.msra.mxu0 0.0
    %956 = vmatprep.subr.mxu0 0.0
    %957 = vmatpush1.msra.mxu0 0.0
    %958 = vmatprep.mubr.f32.mxu0 0.0
    %959 = vmatmul.mubr.f32.gmra.mrb[0].mxu0 %v892
    %v960 = vpop.f32.mrb[0].mxu0
    %v961 = vadd.f32 0.0, %v960
    %v962 = vpop.f32.mrb[0].mxu0
    %963 = vdwg.mxu0
    %v964 = vadd.f32 %v180, %v961
    %v965 = vxor.u32 %v964, 2147483648
    %v966 = vmul.f32 %v965, 1.442695
    %v967 = vpow.pop %v966
    %v968 = vadd.f32 %v967, 1.0
    %v969 = vrcp.pop %v968
    %v970 = vmul.f32 1.0, %v969
    %v971 = vmul.f32 %v970, 2.0
    %v972 = vsub.f32 %v971, 1.0
    %v973 = vmul.f32 %v970, %v882
    %975 = vrot.lane.b32.xlu0 %v972, 64
    %v976 = vpop.permute.xlu0 %975
    %v978 = vmul.f32 %v970, %v976
    %980 = vrot.lane.b32.xlu0 %v978, 32
    %v981 = vpop.permute.xlu0 %980
    %v983 = vadd.f32 %v973, %v981
    %v984 = vtanh.pop %v983
    %986 = vrot.lane.b32.xlu0 %v984, 64
    %v987 = vpop.permute.xlu0 %986
    %v989 = vmul.f32 %v970, %v987
    %v991 = vlaneseq
    %v992 = vshrl.u32 %v991, 7
    %v993 = vsub.s32 0, %v992
    %v994 = vrot.slane %v32, %v993
    %997 = vrot.lane.b32.xlu0 %v989, 32
    %v998 = vpop.permute.xlu0 %997
    %v999 = vsel %vm183, %v998, 0
    %1001 = vmatprep.subr.mxu0 0.0
    %1002 = vmatpush1.msra.mxu0 %v28
    %1003 = vmatprep.subr.mxu0 0.0
    %1004 = vmatpush1.msra.mxu0 %v29
    %1005 = vmatprep.subr.mxu0 0.0
    %1006 = vmatpush1.msra.mxu0 %v30
    %1007 = vmatprep.subr.mxu0 0.0
    %1008 = vmatpush1.msra.mxu0 %v31
    %1009 = vmatprep.subr.mxu0 0.0
    %1010 = vmatpush1.msra.mxu0 0.0
    %1011 = vmatprep.subr.mxu0 0.0
    %1012 = vmatpush1.msra.mxu0 0.0
    %1013 = vmatprep.subr.mxu0 0.0
    %1014 = vmatpush1.msra.mxu0 0.0
    %1015 = vmatprep.subr.mxu0 0.0
    %1016 = vmatpush1.msra.mxu0 0.0
    %1017 = vmatprep.subr.mxu0 0.0
    %1018 = vmatpush1.msra.mxu0 0.0
    %1019 = vmatprep.subr.mxu0 0.0
    %1020 = vmatpush1.msra.mxu0 0.0
    %1021 = vmatprep.subr.mxu0 0.0
    %1022 = vmatpush1.msra.mxu0 0.0
    %1023 = vmatprep.subr.mxu0 0.0
    %1024 = vmatpush1.msra.mxu0 0.0
    %1025 = vmatprep.subr.mxu0 0.0
    %1026 = vmatpush1.msra.mxu0 0.0
    %1027 = vmatprep.subr.mxu0 0.0
    %1028 = vmatpush1.msra.mxu0 0.0
    %1029 = vmatprep.subr.mxu0 0.0
    %1030 = vmatpush1.msra.mxu0 0.0
    %1031 = vmatprep.subr.mxu0 0.0
    %1032 = vmatpush1.msra.mxu0 0.0
    %1033 = vmatprep.subr.mxu0 0.0
    %1034 = vmatpush1.msra.mxu0 0.0
    %1035 = vmatprep.subr.mxu0 0.0
    %1036 = vmatpush1.msra.mxu0 0.0
    %1037 = vmatprep.subr.mxu0 0.0
    %1038 = vmatpush1.msra.mxu0 0.0
    %1039 = vmatprep.subr.mxu0 0.0
    %1040 = vmatpush1.msra.mxu0 0.0
    %1041 = vmatprep.subr.mxu0 0.0
    %1042 = vmatpush1.msra.mxu0 0.0
    %1043 = vmatprep.subr.mxu0 0.0
    %1044 = vmatpush1.msra.mxu0 0.0
    %1045 = vmatprep.subr.mxu0 0.0
    %1046 = vmatpush1.msra.mxu0 0.0
    %1047 = vmatprep.subr.mxu0 0.0
    %1048 = vmatpush1.msra.mxu0 0.0
    %1049 = vmatprep.subr.mxu0 0.0
    %1050 = vmatpush1.msra.mxu0 0.0
    %1051 = vmatprep.subr.mxu0 0.0
    %1052 = vmatpush1.msra.mxu0 0.0
    %1053 = vmatprep.subr.mxu0 0.0
    %1054 = vmatpush1.msra.mxu0 0.0
    %1055 = vmatprep.subr.mxu0 0.0
    %1056 = vmatpush1.msra.mxu0 0.0
    %1057 = vmatprep.subr.mxu0 0.0
    %1058 = vmatpush1.msra.mxu0 0.0
    %1059 = vmatprep.subr.mxu0 0.0
    %1060 = vmatpush1.msra.mxu0 0.0
    %1061 = vmatprep.subr.mxu0 0.0
    %1062 = vmatpush1.msra.mxu0 0.0
    %1063 = vmatprep.subr.mxu0 0.0
    %1064 = vmatpush1.msra.mxu0 0.0
    %1065 = vmatprep.mubr.f32.mxu0 0.0
    %1066 = vmatmul.mubr.f32.gmra.mrb[0].mxu0 %v999
    %v1067 = vpop.f32.mrb[0].mxu0
    %v1068 = vadd.f32 %v994, %v1067
    %v1069 = vpop.f32.mrb[0].mxu0
    %1070 = vdwg.mxu0
    %1071 = vst [vmem:[#allocation3] sm:$0xff] %v1068
    // Predicated region
    $region26: #{lstm4emg_forward.1} parent=1 // pred_check
      _
    $region27: #{lstm4emg_forward.1} parent=1 // pred_check_branch
      %1073 = sbr.rel (0) target = $region29
    $region28: #{lstm4emg_forward.1} parent=1 // pred_region
      %s1075 = ssub.s32 128, 128
      %1076 = vsyncadd [#allocation4], %s1075
      %s1078 = sshll.u32 [#allocation3], 4
      %s1079 = int_to_ptr.vmem [resolvable:$true] %s1078
      %1081 = dma.vmem_to_hbm [thread:$0]  %s1079, 128, %s6, [#allocation4]
    $region29: #{lstm4emg_forward.1} parent=1 // pred_fallthru
      _
    // Predicated region
    $region30: #{lstm4emg_forward.1} parent=1 // pred_check
      _
    $region31: #{lstm4emg_forward.1} parent=1 // pred_check_branch
      %1083 = sbr.rel (0) target = $region33
    $region32: #{lstm4emg_forward.1} parent=1 // pred_region
      %1084 = dma.done [#allocation4], 128
    $region33: #{lstm4emg_forward.1} parent=1 // pred_fallthru
      _
    %1085 = vsyncpa [#allocation4], 1

</llo_original>
